<compile_context>
chip_gen: v7x
topology: tpu7x:2x2x1
jax: 0.10.0
libtpu: 0.0.40
codegen_flags: <defaults>
</compile_context>

<pallas_src>
import functools

import jax
import jax.numpy as jnp
from jax.experimental import pallas as pl
from jax.experimental.pallas import tpu as pltpu

LN_EPS = 1e-5


def _round_up(x, m):
    return (x + m - 1) // m * m


# ----------------------------- Pallas kernel -------------------------------
def spt_kernel(x_ref, w_ref, bias_ref, o_ref, *, inv_k):
    # x_ref:    (tm, K)   bf16 token tile (any padded M-tail rows are zero)
    # w_ref:    (K, dim)  bf16 gamma-folded Linear weight (VMEM-resident)
    # bias_ref: (1, dim)  f32  folded bias (beta @ W + b)  (VMEM-resident)
    # o_ref:    (tm, dim) bf16 output tile
    x = x_ref[...].astype(jnp.float32)

    # One-pass LayerNorm stats (biased variance + eps, like torch.nn.LayerNorm).
    # E[x^2]-E[x]^2 form avoids the (tm, K) f32 `centered` temporary; fine in
    # f32 for unit-scale activations, clamped at 0 against cancellation.
    s1 = jnp.sum(x, axis=-1, keepdims=True)
    s2 = jnp.sum(x * x, axis=-1, keepdims=True)
    mean = s1 * inv_k
    var = jnp.maximum(s2 * inv_k - mean * mean, 0.0)
    xn = (x - mean) * jax.lax.rsqrt(var + LN_EPS)

    # gamma/beta are folded into w/bias, so project the raw normalized tokens.
    # bf16 operands on the MXU, f32 accumulation.
    out = jnp.dot(xn.astype(jnp.bfloat16), w_ref[...],
                  preferred_element_type=jnp.float32) + bias_ref[...]
    o_ref[...] = out.astype(o_ref.dtype)


def spt_tokens_pallas(tokens, w, b, *, tm_max=4096, out_dtype=jnp.bfloat16):
    """tokens: (M, K) bf16 -> (M, dim) out_dtype, fused LayerNorm + Linear."""
    M, K = tokens.shape
    dim = w.shape[1]

    # Tile selection: big row tiles (>= ~2 MB/step) amortize the fixed
    # per-step pipeline cost.  If a single tile would cover everything but the
    # problem is still sizeable, split into two blocks so both v7x TensorCores
    # get work; tiny problems stay a single block.
    m8 = _round_up(M, 8)
    if m8 > tm_max:
        tm = tm_max
    elif m8 >= 1024:
        tm = _round_up(-(-m8 // 2), 8)   # two roughly-equal blocks
    else:
        tm = m8
    m_pad = _round_up(m8, tm)
    if m_pad != M:
        # Zero rows: mean=0, var=0 -> xn=0 -> out=bias (finite); sliced off.
        tokens = jnp.pad(tokens, ((0, m_pad - M), (0, 0)))
    grid = (m_pad // tm,)

    cost = pl.CostEstimate(
        flops=2 * m_pad * K * dim + 8 * m_pad * K,
        transcendentals=m_pad,
        bytes_accessed=(m_pad * K * 2 + K * dim * 2
                        + m_pad * dim * jnp.dtype(out_dtype).itemsize
                        + dim * 4),
    )

    out = pl.pallas_call(
        functools.partial(spt_kernel, inv_k=1.0 / float(K)),
        out_shape=jax.ShapeDtypeStruct((m_pad, dim), out_dtype),
        grid_spec=pltpu.PrefetchScalarGridSpec(
            num_scalar_prefetch=0,
            grid=grid,
            in_specs=[
                pl.BlockSpec((tm, K), lambda i: (i, 0)),
                pl.BlockSpec((K, dim), lambda i: (0, 0)),   # resident weight
                pl.BlockSpec((1, dim), lambda i: (0, 0)),   # resident bias
            ],
            out_specs=pl.BlockSpec((tm, dim), lambda i: (i, 0)),
        ),
        compiler_params=pltpu.CompilerParams(
            dimension_semantics=("parallel",),
            vmem_limit_bytes=64 * 1024 * 1024,
        ),
        cost_estimate=cost,
    )(tokens, w, b)
    return out[:M]


# ------------------------------- JAX glue ----------------------------------
def spt_forward(x, params, *, patch_size):
    """x: (B, C, H, W) NCHW f32 -> (B, num_patches, dim) bf16."""
    B, C, H, W = x.shape
    p = patch_size
    h, w = H // p, W // p
    c5 = 5 * C
    patch_dim = p * p * c5

    # Pad once, cast to bf16 BEFORE the 5x expansion (halves the bytes moved
    # by the stack + big patch transpose), then take 5 shifted strided views
    # (instead of 4 F.pads + a 5C concat), with channels already minor so the
    # patch rearrange moves contiguous chunks.
    xp = jnp.pad(x, ((0, 0), (0, 0), (1, 1), (1, 1)))
    xp = jnp.transpose(xp, (0, 2, 3, 1)).astype(jnp.bfloat16)  # (B, H+2, W+2, C)
    views = (
        xp[:, 1:H + 1, 1:W + 1, :],                      # identity
        xp[:, 1:H + 1, 0:W, :],                          # F.pad (1, -1, 0, 0)
        xp[:, 1:H + 1, 2:W + 2, :],                      # F.pad (-1, 1, 0, 0)
        xp[:, 0:H, 1:W + 1, :],                          # F.pad (0, 0, 1, -1)
        xp[:, 2:H + 2, 1:W + 1, :],                      # F.pad (0, 0, -1, 1)
    )
    xs = jnp.stack(views, axis=3)                        # (B, H, W, 5, C)

    # Rearrange 'b c (h p1) (w p2) -> b (h w) (p1 p2 c)' where c is the 5C
    # concat axis (shift-major, channel-minor) — matches torch.cat order.
    t = xs.reshape(B, h, p, w, p, c5)
    t = jnp.transpose(t, (0, 1, 3, 2, 4, 5))             # (B, h, w, p1, p2, 5C)
    tokens = t.reshape(B * h * w, patch_dim)             # (M, 240) bf16

    # Fold the LayerNorm affine into the Linear (computed once, in f32).
    gamma = params["ln_gamma"]                           # (1, patch_dim) f32
    beta = params["ln_beta"]                             # (1, patch_dim) f32
    w_mat = params["lin_w"]                              # (patch_dim, dim) f32
    w_fold = (w_mat * gamma[0][:, None]).astype(jnp.bfloat16)
    b_fold = (beta @ w_mat + params["lin_b"]).astype(jnp.float32)  # (1, dim)

    out = spt_tokens_pallas(tokens, w_fold, b_fold)
    dim = w_mat.shape[1]
    return out.reshape(B, h * w, dim)


# ---------------------- Pure-JAX reference (f32, no Pallas) -----------------
def _f_pad_2d(x, pad):
    """Emulate torch.nn.functional.F.pad(x, (l, r, t, b)) on NCHW (neg = crop)."""
    l, r, t, bm = pad
    x = jnp.pad(
        x,
        ((0, 0), (0, 0), (max(t, 0), max(bm, 0)), (max(l, 0), max(r, 0))),
    )
    h0, h1 = max(-t, 0), x.shape[2] - max(-bm, 0)
    w0, w1 = max(-l, 0), x.shape[3] - max(-r, 0)
    return x[:, :, h0:h1, w0:w1]


def spt_forward_ref(x, params, *, patch_size):
    shifts = ((1, -1, 0, 0), (-1, 1, 0, 0), (0, 0, 1, -1), (0, 0, -1, 1))
    shifted = [_f_pad_2d(x, s) for s in shifts]
    x_cat = jnp.concatenate([x, *shifted], axis=1)
    B, C5, H, W = x_cat.shape
    p = patch_size
    h, w = H // p, W // p
    t = x_cat.reshape(B, C5, h, p, w, p)
    t = jnp.transpose(t, (0, 2, 4, 3, 5, 1))
    tokens = t.reshape(B, h * w, p * p * C5)
    mean = jnp.mean(tokens, axis=-1, keepdims=True)
    var = jnp.mean((tokens - mean) ** 2, axis=-1, keepdims=True)
    xn = (tokens - mean) * jax.lax.rsqrt(var + LN_EPS)
    y = xn * params["ln_gamma"][0] + params["ln_beta"][0]
    return y @ params["lin_w"] + params["lin_b"][0]


# --------------------------------- main -------------------------------------
if __name__ == "__main__":
    # Small shapes consistent with the module (default channels=3)
    B, C, H, W = 2, 3, 16, 16
    patch_size = 4
    dim = 32
    patch_dim = patch_size * patch_size * 5 * C  # 240

    key = jax.random.PRNGKey(0)
    kx, kw, kb, kg, kbt = jax.random.split(key, 5)

    x = jax.random.normal(kx, (B, C, H, W), dtype=jnp.float32)

    # Deterministic parameter init (synthetic; no checkpoint loading)
    params = {
        "ln_gamma": 1.0 + 0.1 * jax.random.normal(kg, (1, patch_dim), jnp.float32),
        "ln_beta": 0.05 * jax.random.normal(kbt, (1, patch_dim), jnp.float32),
        "lin_w": jax.random.normal(kw, (patch_dim, dim), jnp.float32)
        * (1.0 / jnp.sqrt(patch_dim)),
        "lin_b": jax.random.normal(kb, (1, dim), jnp.float32) * 0.01,
    }

    out = spt_forward(x, params, patch_size=patch_size)
    out = jax.block_until_ready(out)

    ref = spt_forward_ref(x, params, patch_size=patch_size)
    assert out.shape == (B, (H // patch_size) * (W // patch_size), dim)
    assert out.dtype == jnp.bfloat16
    # bf16 tokens (rounded before LN), bf16 gamma-folded W, bf16 output
    # (f32 LN stats + f32 MXU accumulation) => loosened tolerance.
    out_f32 = out.astype(jnp.float32)
    err = float(jnp.max(jnp.abs(out_f32 - ref)))
    assert jnp.allclose(out_f32, ref, atol=7.5e-2, rtol=7.5e-2), err

    print("KERNEL_OK")
</pallas_src>

<mosaic_0001>
module attributes {stable_mosaic.version = 11 : i64} {
  func.func @spt_kernel(%arg0: i32, %arg1: memref<32x240xbf16, #tpu.memory_space<vmem>>, %arg2: memref<240x32xbf16, #tpu.memory_space<vmem>>, %arg3: memref<1x32xf32, #tpu.memory_space<vmem>>, %arg4: memref<32x32xbf16, #tpu.memory_space<vmem>>) attributes {dimension_semantics = [#tpu.dimension_semantics<parallel>], iteration_bounds = array<i64: 1>, scalar_prefetch = 0 : i64, scratch_operands = 0 : i64, tpu.core_type = #tpu.core_type<tc>, window_params = [{transform_indices = @transform_0, window_bounds = array<i64: 32, 240>}, {pipeline_mode = #tpu.pipeline_mode<synchronous>, transform_indices = @transform_1, window_bounds = array<i64: 240, 32>}, {pipeline_mode = #tpu.pipeline_mode<synchronous>, transform_indices = @transform_2, window_bounds = array<i64: 1, 32>}, {transform_indices = @transform_3, window_bounds = array<i64: 32, 32>}]} {
    %c0 = arith.constant 0 : index
    %c0_0 = arith.constant 0 : index
    %0 = vector.load %arg1[%c0, %c0_0] : memref<32x240xbf16, #tpu.memory_space<vmem>>, vector<32x240xbf16>
    %1 = arith.extf %0 : vector<32x240xbf16> to vector<32x240xf32>
    %cst = arith.constant dense<0.000000e+00> : vector<32xf32>
    %2 = vector.multi_reduction <add>, %1, %cst [1] : vector<32x240xf32> to vector<32xf32>
    %3 = vector.shape_cast %2 : vector<32xf32> to vector<32x1xf32>
    %4 = arith.mulf %1, %1 : vector<32x240xf32>
    %cst_1 = arith.constant dense<0.000000e+00> : vector<32xf32>
    %5 = vector.multi_reduction <add>, %4, %cst_1 [1] : vector<32x240xf32> to vector<32xf32>
    %6 = vector.shape_cast %5 : vector<32xf32> to vector<32x1xf32>
    %cst_2 = arith.constant 0.00416666688 : f32
    %7 = vector.broadcast %cst_2 : f32 to vector<32x1xf32>
    %8 = arith.mulf %3, %7 : vector<32x1xf32>
    %cst_3 = arith.constant 0.00416666688 : f32
    %9 = vector.broadcast %cst_3 : f32 to vector<32x1xf32>
    %10 = arith.mulf %6, %9 : vector<32x1xf32>
    %11 = arith.mulf %8, %8 : vector<32x1xf32>
    %12 = arith.subf %10, %11 : vector<32x1xf32>
    %cst_4 = arith.constant 0.000000e+00 : f32
    %13 = vector.broadcast %cst_4 : f32 to vector<32x1xf32>
    %14 = arith.maximumf %12, %13 : vector<32x1xf32>
    %15 = vector.broadcast %8 : vector<32x1xf32> to vector<32x240xf32>
    %16 = arith.subf %1, %15 : vector<32x240xf32>
    %cst_5 = arith.constant 9.99999974E-6 : f32
    %17 = vector.broadcast %cst_5 : f32 to vector<32x1xf32>
    %18 = arith.addf %14, %17 : vector<32x1xf32>
    %19 = math.rsqrt %18 : vector<32x1xf32>
    %20 = vector.broadcast %19 : vector<32x1xf32> to vector<32x240xf32>
    %21 = arith.mulf %16, %20 : vector<32x240xf32>
    %22 = arith.truncf %21 : vector<32x240xf32> to vector<32x240xbf16>
    %c0_6 = arith.constant 0 : index
    %c0_7 = arith.constant 0 : index
    %23 = vector.load %arg2[%c0_6, %c0_7] : memref<240x32xbf16, #tpu.memory_space<vmem>>, vector<240x32xbf16>
    %cst_8 = arith.constant dense<0.000000e+00> : vector<32x32xf32>
    %24 = tpu.matmul %22, %23, %cst_8 {dimension_numbers = #tpu.dot_dimension_numbers<[1], [0], [0], [1], [0, 0, 1, 1], [], []>} : vector<32x240xbf16>, vector<240x32xbf16>, vector<32x32xf32> -> vector<32x32xf32>
    %c0_9 = arith.constant 0 : index
    %c0_10 = arith.constant 0 : index
    %25 = vector.load %arg3[%c0_9, %c0_10] : memref<1x32xf32, #tpu.memory_space<vmem>>, vector<1x32xf32>
    %26 = vector.broadcast %25 : vector<1x32xf32> to vector<32x32xf32>
    %27 = arith.addf %24, %26 : vector<32x32xf32>
    %28 = arith.truncf %27 : vector<32x32xf32> to vector<32x32xbf16>
    %c0_11 = arith.constant 0 : index
    %c0_12 = arith.constant 0 : index
    %29 = vector.load %arg4[%c0_11, %c0_12] : memref<32x32xbf16, #tpu.memory_space<vmem>>, vector<32x32xbf16>
    tpu.vector_store %arg4[%c0_11, %c0_12], %28 {strides = array<i32>} : memref<32x32xbf16, #tpu.memory_space<vmem>>, vector<32x32xbf16>,
    return
  }
  func.func @transform_0(%arg0: i32) -> (i32, i32) {
    %c0_i32 = arith.constant 0 : i32
    %c0_i32_0 = arith.constant 0 : i32
    return %arg0, %c0_i32 : i32, i32
  }
  func.func @transform_1(%arg0: i32) -> (i32, i32) {
    %c0_i32 = arith.constant 0 : i32
    %c0_i32_0 = arith.constant 0 : i32
    %c0_i32_1 = arith.constant 0 : i32
    return %c0_i32, %c0_i32_0 : i32, i32
  }
  func.func @transform_2(%arg0: i32) -> (i32, i32) {
    %c0_i32 = arith.constant 0 : i32
    %c0_i32_0 = arith.constant 0 : i32
    %c0_i32_1 = arith.constant 0 : i32
    return %c0_i32, %c0_i32_0 : i32, i32
  }
  func.func @transform_3(%arg0: i32) -> (i32, i32) {
    %c0_i32 = arith.constant 0 : i32
    %c0_i32_0 = arith.constant 0 : i32
    return %arg0, %c0_i32 : i32, i32
  }
}

</mosaic_0001>

<llo_original>
// kernel: tpu_custom_call.1
$region0: #{tpu_custom_call.1}
  #allocation0 [shape = 'u32[]', space=smem, size = 0x4, offset = 0x4, fixed_abs, tag = 'smem constant byte address 0x4 - core index']
  #allocation1 [shape = 'u32[144,128]{1,0:T(1,128)}', space=vmem, size = 0x12000, scoped, tag = 'internal scratch']
  %s0 = inlined_call_operand.hbm [shape: bf16[32,240], index: 0, kind: input, shape index: {}]
  %s1 = inlined_call_operand.hbm [shape: bf16[240,32], index: 1, kind: input, shape index: {}]
  %s2 = inlined_call_operand.hbm [shape: f32[1,32], index: 2, kind: input, shape index: {}]
  %s3 = inlined_call_operand.hbm [shape: bf16[32,32], index: 3, kind: output, shape index: {}]
  %s4 = sld [smem:[#allocation0]]
  $region34: #{tpu_custom_call.1} parent=0
    _
  %s6 = ssub.s32 1, %s4
  %s7 = scalar_select 0, %s6, %s4
  $region1: #{tpu_custom_call.1} parent=0
    #allocation2 [shape = 'u8[16384]{0}', space=vmem, size = 0x4000, scoped, tag = 'input window, operand 0, single buffered']
    #allocation3 [shape = 's32[1]{0}', space=sflag, size = 0x4, scoped, tag = 'scoped memory for tpu_custom_call.1']
    #allocation4 [shape = 's32[1]{0}', space=sflag, size = 0x4, scoped, tag = 'scoped memory for tpu_custom_call.1']
    #allocation5 [shape = 'u8[61440]{0}', space=vmem, size = 0xf000, scoped, tag = 'input window, operand 1, single buffered']
    #allocation6 [shape = 's32[1]{0}', space=sflag, size = 0x4, scoped, tag = 'scoped memory for tpu_custom_call.1']
    #allocation7 [shape = 'u8[512]{0}', space=vmem, size = 0x400, scoped, tag = 'input window, operand 2, single buffered']
    #allocation8 [shape = 'u8[8192]{0}', space=vmem, size = 0x2000, scoped, tag = 'output window, operand 0, single buffered']
    %8 = vsyncpa [#allocation3], 0
    %9 = vsyncpa [#allocation6], 0
    %10 = vsyncpa [#allocation4], 0
    // Predicated region
    $region2: #{tpu_custom_call.1} parent=1 // pred_check
      _
    $region3: #{tpu_custom_call.1} parent=1 // pred_check_branch
      %12 = sbr.rel (0) target = $region5
    $region4: #{tpu_custom_call.1} parent=1 // pred_region
      %s14 = ssub.s32 512, 512
      %15 = vsyncadd [#allocation3], %s14
      %s16 = sshll.u32 [#allocation2], 4
      %s17 = int_to_ptr.vmem [resolvable:$true] %s16
      %22 = dma.hbm_to_vmem [thread:$0]  %s0, 512, %s17, [#allocation3], 128, 128, 8
    $region5: #{tpu_custom_call.1} parent=1 // pred_fallthru
      _
    // Predicated region
    $region6: #{tpu_custom_call.1} parent=1 // pred_check
      _
    $region7: #{tpu_custom_call.1} parent=1 // pred_check_branch
      %24 = sbr.rel (0) target = $region9
    $region8: #{tpu_custom_call.1} parent=1 // pred_region
      %s26 = ssub.s32 1920, 1920
      %27 = vsyncadd [#allocation6], %s26
      %s28 = sshll.u32 [#allocation5], 4
      %s29 = int_to_ptr.vmem [resolvable:$true] %s28
      %34 = dma.hbm_to_vmem [thread:$0]  %s1, 1920, %s29, [#allocation6], 64, 64, 4
    $region9: #{tpu_custom_call.1} parent=1 // pred_fallthru
      _
    // Predicated region
    $region10: #{tpu_custom_call.1} parent=1 // pred_check
      _
    $region11: #{tpu_custom_call.1} parent=1 // pred_check_branch
      %36 = sbr.rel (0) target = $region13
    $region12: #{tpu_custom_call.1} parent=1 // pred_region
      %s38 = ssub.s32 16, 16
      %39 = vsyncadd [#allocation6], %s38
      %s41 = sshll.u32 [#allocation7], 4
      %s42 = int_to_ptr.vmem [resolvable:$true] %s41
      %44 = dma.hbm_to_vmem [thread:$0]  %s2, 16, %s42, [#allocation6]
    $region13: #{tpu_custom_call.1} parent=1 // pred_fallthru
      _
    // Predicated region
    $region14: #{tpu_custom_call.1} parent=1 // pred_check
      _
    $region15: #{tpu_custom_call.1} parent=1 // pred_check_branch
      %46 = sbr.rel (0) target = $region17
    $region16: #{tpu_custom_call.1} parent=1 // pred_region
      %47 = dma.done [#allocation3], 512
    $region17: #{tpu_custom_call.1} parent=1 // pred_fallthru
      _
    // Predicated region
    $region18: #{tpu_custom_call.1} parent=1 // pred_check
      _
    $region19: #{tpu_custom_call.1} parent=1 // pred_check_branch
      %49 = sbr.rel (0) target = $region21
    $region20: #{tpu_custom_call.1} parent=1 // pred_region
      %50 = dma.done [#allocation6], 1920
    $region21: #{tpu_custom_call.1} parent=1 // pred_fallthru
      _
    // Predicated region
    $region22: #{tpu_custom_call.1} parent=1 // pred_check
      _
    $region23: #{tpu_custom_call.1} parent=1 // pred_check_branch
      %52 = sbr.rel (0) target = $region25
    $region24: #{tpu_custom_call.1} parent=1 // pred_region
      %53 = dma.done [#allocation6], 16
    $region25: #{tpu_custom_call.1} parent=1 // pred_fallthru
      _
    %v55 = vld [vmem:[#allocation2] sm:$0xff]
    %v56 = vld [vmem:[#allocation2 + $0x8] sm:$0xff]
    %v57 = vld [vmem:[#allocation2 + $0x10] sm:$0xff]
    %v58 = vld [vmem:[#allocation2 + $0x18] sm:$0xff]
    %v59 = vunpack.c.l.bf16 %v55
    %v60 = vunpack.c.h.bf16 %v55
    %v61 = vunpack.c.l.bf16 %v56
    %v62 = vunpack.c.h.bf16 %v56
    %v63 = vunpack.c.l.bf16 %v57
    %v64 = vunpack.c.h.bf16 %v57
    %v65 = vunpack.c.l.bf16 %v58
    %v66 = vunpack.c.h.bf16 %v58
    %vm67 = vcmask 916480
    %v68 = vsel %vm67, %v60, 0.0
    %v69 = vadd.f32 %v59, %v68
    %70 = vadd.xlane.f32.xlu0 %v69
    %v71 = vpop.xlane.xlu0 %70
    %v72 = vsel %vm67, %v62, 0.0
    %v73 = vadd.f32 %v61, %v72
    %74 = vadd.xlane.f32.xlu0 %v73
    %v75 = vpop.xlane.xlu0 %74
    %v76 = vsel %vm67, %v64, 0.0
    %v77 = vadd.f32 %v63, %v76
    %78 = vadd.xlane.f32.xlu0 %v77
    %v79 = vpop.xlane.xlu0 %78
    %v80 = vsel %vm67, %v66, 0.0
    %v81 = vadd.f32 %v65, %v80
    %82 = vadd.xlane.f32.xlu0 %v81
    %v83 = vpop.xlane.xlu0 %82
    %v84 = vmul.f32 %v59, %v59
    %v85 = vmul.f32 %v60, %v60
    %v86 = vmul.f32 %v61, %v61
    %v87 = vmul.f32 %v62, %v62
    %v88 = vmul.f32 %v63, %v63
    %v89 = vmul.f32 %v64, %v64
    %v90 = vmul.f32 %v65, %v65
    %v91 = vmul.f32 %v66, %v66
    %v92 = vsel %vm67, %v85, 0.0
    %v93 = vadd.f32 %v84, %v92
    %94 = vadd.xlane.f32.xlu0 %v93
    %v95 = vpop.xlane.xlu0 %94
    %v96 = vsel %vm67, %v87, 0.0
    %v97 = vadd.f32 %v86, %v96
    %98 = vadd.xlane.f32.xlu0 %v97
    %v99 = vpop.xlane.xlu0 %98
    %v100 = vsel %vm67, %v89, 0.0
    %v101 = vadd.f32 %v88, %v100
    %102 = vadd.xlane.f32.xlu0 %v101
    %v103 = vpop.xlane.xlu0 %102
    %v104 = vsel %vm67, %v91, 0.0
    %v105 = vadd.f32 %v90, %v104
    %106 = vadd.xlane.f32.xlu0 %v105
    %v107 = vpop.xlane.xlu0 %106
    %v108 = vmul.f32 %v71, 0.004166667
    %v109 = vmul.f32 %v75, 0.004166667
    %v110 = vmul.f32 %v79, 0.004166667
    %v111 = vmul.f32 %v83, 0.004166667
    %v112 = vmul.f32 %v95, 0.004166667
    %v113 = vmul.f32 %v99, 0.004166667
    %v114 = vmul.f32 %v103, 0.004166667
    %v115 = vmul.f32 %v107, 0.004166667
    %v116 = vmul.f32 %v108, %v108
    %v117 = vmul.f32 %v109, %v109
    %v118 = vmul.f32 %v110, %v110
    %v119 = vmul.f32 %v111, %v111
    %v120 = vsub.f32 %v112, %v116
    %v121 = vsub.f32 %v113, %v117
    %v122 = vsub.f32 %v114, %v118
    %v123 = vsub.f32 %v115, %v119
    %v124 = vmax.f32 %v120, 0.0
    %v125 = vmax.f32 %v121, 0.0
    %v126 = vmax.f32 %v122, 0.0
    %v127 = vmax.f32 %v123, 0.0
    %v128 = vsub.f32 %v59, %v108
    %v129 = vsub.f32 %v60, %v108
    %v130 = vsub.f32 %v61, %v109
    %v131 = vsub.f32 %v62, %v109
    %v132 = vsub.f32 %v63, %v110
    %v133 = vsub.f32 %v64, %v110
    %v134 = vsub.f32 %v65, %v111
    %v135 = vsub.f32 %v66, %v111
    %v136 = vadd.f32 %v124, 1e-05
    %v137 = vadd.f32 %v125, 1e-05
    %v138 = vadd.f32 %v126, 1e-05
    %v139 = vadd.f32 %v127, 1e-05
    %v140 = vrsqrt.pop %v136
    %v141 = vrsqrt.pop %v137
    %v142 = vrsqrt.pop %v138
    %v143 = vrsqrt.pop %v139
    %v144 = vmul.f32 %v128, %v140
    %v145 = vmul.f32 %v129, %v140
    %v146 = vmul.f32 %v130, %v141
    %v147 = vmul.f32 %v131, %v141
    %v148 = vmul.f32 %v132, %v142
    %v149 = vmul.f32 %v133, %v142
    %v150 = vmul.f32 %v134, %v143
    %v151 = vmul.f32 %v135, %v143
    %v152 = vpack.c.bf16 %v146, %v144
    %v153 = vpack.c.bf16 %v147, %v145
    %v154 = vpack.c.bf16 %v150, %v148
    %v155 = vpack.c.bf16 %v151, %v149
    %v156 = vld [vmem:[#allocation5] sm:$0xf]
    %v157 = vld [vmem:[#allocation5 + $0x4] sm:$0xf]
    %v158 = vld [vmem:[#allocation5 + $0x8] sm:$0xf]
    %v159 = vld [vmem:[#allocation5 + $0xc] sm:$0xf]
    %v160 = vld [vmem:[#allocation5 + $0x10] sm:$0xf]
    %v161 = vld [vmem:[#allocation5 + $0x14] sm:$0xf]
    %v162 = vld [vmem:[#allocation5 + $0x18] sm:$0xf]
    %v163 = vld [vmem:[#allocation5 + $0x1c] sm:$0xf]
    %v164 = vld [vmem:[#allocation5 + $0x20] sm:$0xf]
    %v165 = vld [vmem:[#allocation5 + $0x24] sm:$0xf]
    %v166 = vld [vmem:[#allocation5 + $0x28] sm:$0xf]
    %v167 = vld [vmem:[#allocation5 + $0x2c] sm:$0xf]
    %v168 = vld [vmem:[#allocation5 + $0x30] sm:$0xf]
    %v169 = vld [vmem:[#allocation5 + $0x34] sm:$0xf]
    %v170 = vld [vmem:[#allocation5 + $0x38] sm:$0xf]
    %v171 = vld [vmem:[#allocation5 + $0x3c] sm:$0xf]
    %v172 = vld [vmem:[#allocation5 + $0x40] sm:$0xf]
    %v173 = vld [vmem:[#allocation5 + $0x44] sm:$0xf]
    %v174 = vld [vmem:[#allocation5 + $0x48] sm:$0xf]
    %v175 = vld [vmem:[#allocation5 + $0x4c] sm:$0xf]
    %v176 = vld [vmem:[#allocation5 + $0x50] sm:$0xf]
    %v177 = vld [vmem:[#allocation5 + $0x54] sm:$0xf]
    %v178 = vld [vmem:[#allocation5 + $0x58] sm:$0xf]
    %v179 = vld [vmem:[#allocation5 + $0x5c] sm:$0xf]
    %v180 = vld [vmem:[#allocation5 + $0x60] sm:$0xf]
    %v181 = vld [vmem:[#allocation5 + $0x64] sm:$0xf]
    %v182 = vld [vmem:[#allocation5 + $0x68] sm:$0xf]
    %v183 = vld [vmem:[#allocation5 + $0x6c] sm:$0xf]
    %v184 = vld [vmem:[#allocation5 + $0x70] sm:$0xf]
    %v185 = vld [vmem:[#allocation5 + $0x74] sm:$0xf]
    %v186 = vld [vmem:[#allocation7] sm:$0x1]
    %v188 = vlaneseq
    %v189 = vshrl.u32 %v188, 7
    %v190 = vsub.s32 0, %v189
    %v191 = vrot.slane %v186, %v190
    %v223 = vunpack.c.l.b16 %v156
    %v224 = vunpack.c.l.b16 %v157
    %v225 = vunpack.c.l.b16 %v158
    %v226 = vunpack.c.l.b16 %v159
    %v227 = vunpack.c.l.b16 %v160
    %v228 = vunpack.c.l.b16 %v161
    %v229 = vunpack.c.l.b16 %v162
    %v230 = vunpack.c.l.b16 %v163
    %v231 = vunpack.c.l.b16 %v164
    %v232 = vunpack.c.l.b16 %v165
    %v233 = vunpack.c.l.b16 %v166
    %v234 = vunpack.c.l.b16 %v167
    %v235 = vunpack.c.l.b16 %v168
    %v236 = vunpack.c.l.b16 %v169
    %v237 = vunpack.c.l.b16 %v170
    %v238 = vunpack.c.l.b16 %v171
    %v239 = vunpack.c.l.b16 %v172
    %v240 = vunpack.c.l.b16 %v173
    %v241 = vunpack.c.l.b16 %v174
    %v242 = vunpack.c.l.b16 %v175
    %v243 = vunpack.c.l.b16 %v176
    %v244 = vunpack.c.l.b16 %v177
    %v245 = vunpack.c.l.b16 %v178
    %v246 = vunpack.c.l.b16 %v179
    %v247 = vunpack.c.l.b16 %v180
    %v248 = vunpack.c.l.b16 %v181
    %v249 = vunpack.c.l.b16 %v182
    %v250 = vunpack.c.l.b16 %v183
    %v251 = vunpack.c.l.b16 %v184
    %v252 = vunpack.c.l.b16 %v185
    %v253 = vpack.c.b16 %v224, %v223
    %v254 = vpack.c.b16 %v226, %v225
    %v255 = vpack.c.b16 %v228, %v227
    %v256 = vpack.c.b16 %v230, %v229
    %v257 = vpack.c.b16 %v232, %v231
    %v258 = vpack.c.b16 %v234, %v233
    %v259 = vpack.c.b16 %v236, %v235
    %v260 = vpack.c.b16 %v238, %v237
    %v261 = vpack.c.b16 %v240, %v239
    %v262 = vpack.c.b16 %v242, %v241
    %v263 = vpack.c.b16 %v244, %v243
    %v264 = vpack.c.b16 %v246, %v245
    %v265 = vpack.c.b16 %v248, %v247
    %v266 = vpack.c.b16 %v250, %v249
    %v267 = vpack.c.b16 %v252, %v251
    %v284 = vsel %vm67, %v153, 0
    %v287 = vsel %vm67, %v155, 0
    %289 = vmatprep.subr.bf16.mxu0 0
    %290 = vmatpush1.bf16.msra.mxu0 %v253
    %291 = vmatprep.subr.bf16.mxu0 0
    %292 = vmatpush1.bf16.msra.mxu0 %v254
    %293 = vmatprep.subr.bf16.mxu0 0
    %294 = vmatpush1.bf16.msra.mxu0 %v255
    %295 = vmatprep.subr.bf16.mxu0 0
    %296 = vmatpush1.bf16.msra.mxu0 %v256
    %297 = vmatprep.subr.bf16.mxu0 0
    %298 = vmatpush1.bf16.msra.mxu0 %v257
    %299 = vmatprep.subr.bf16.mxu0 0
    %300 = vmatpush1.bf16.msra.mxu0 %v258
    %301 = vmatprep.subr.bf16.mxu0 0
    %302 = vmatpush1.bf16.msra.mxu0 %v259
    %303 = vmatprep.subr.bf16.mxu0 0
    %304 = vmatpush1.bf16.msra.mxu0 %v260
    %305 = vmatprep.subr.bf16.mxu0 0
    %306 = vmatpush1.bf16.msra.mxu0 %v261
    %307 = vmatprep.subr.bf16.mxu0 0
    %308 = vmatpush1.bf16.msra.mxu0 %v262
    %309 = vmatprep.subr.bf16.mxu0 0
    %310 = vmatpush1.bf16.msra.mxu0 %v263
    %311 = vmatprep.subr.bf16.mxu0 0
    %312 = vmatpush1.bf16.msra.mxu0 %v264
    %313 = vmatprep.subr.bf16.mxu0 0
    %314 = vmatpush1.bf16.msra.mxu0 %v265
    %315 = vmatprep.subr.bf16.mxu0 0
    %316 = vmatpush1.bf16.msra.mxu0 %v266
    %317 = vmatprep.subr.bf16.mxu0 0
    %318 = vmatpush1.bf16.msra.mxu0 %v267
    %319 = vmatprep.subr.bf16.mxu0 0
    %320 = vmatpush1.bf16.msra.mxu0 0
    %321 = vmatprep.mubr.bf16.mxu0 %v284
    %322 = vmatmul.mubr.bf16.gmra.mrb[0].mxu0 %v152
    %v323 = vpop.f32.mrb[0].mxu0
    %v324 = vadd.f32 %v191, %v323
    %v325 = vpop.f32.mrb[0].mxu0
    %v326 = vpop.f32.mrb[0].mxu0
    %v327 = vadd.f32 %v191, %v326
    %v328 = vpop.f32.mrb[0].mxu0
    %329 = vmatprep.mubr.bf16.mxu0 %v287
    %330 = vmatmul.mubr.bf16.gmra.mrb[0].mxu0 %v154
    %v331 = vpop.f32.mrb[0].mxu0
    %v332 = vadd.f32 %v191, %v331
    %v333 = vpop.f32.mrb[0].mxu0
    %v334 = vpop.f32.mrb[0].mxu0
    %v335 = vadd.f32 %v191, %v334
    %v336 = vpop.f32.mrb[0].mxu0
    %337 = vdwg.mxu0
    %v338 = vpack.c.bf16 %v327, %v324
    %v339 = vpack.c.bf16 %v335, %v332
    %v342 = vunpack.c.l.b16 %v338
    %v343 = vunpack.c.h.b16 %v338
    %v344 = vunpack.c.l.b16 %v339
    %v345 = vunpack.c.h.b16 %v339
    %v346 = vpack.c.b16 %v342, %v342
    %v347 = vpack.c.b16 %v343, %v343
    %v348 = vpack.c.b16 %v344, %v344
    %v349 = vpack.c.b16 %v345, %v345
    %vm354 = vcmask 257024
    %355 = vst.msk [vmem:[#allocation8] sm:$0xf] %vm354, %v346
    %356 = vst.msk [vmem:[#allocation8 + $0x4] sm:$0xf] %vm354, %v347
    %357 = vst.msk [vmem:[#allocation8 + $0x8] sm:$0xf] %vm354, %v348
    %358 = vst.msk [vmem:[#allocation8 + $0xc] sm:$0xf] %vm354, %v349
    // Predicated region
    $region26: #{tpu_custom_call.1} parent=1 // pred_check
      _
    $region27: #{tpu_custom_call.1} parent=1 // pred_check_branch
      %360 = sbr.rel (0) target = $region29
    $region28: #{tpu_custom_call.1} parent=1 // pred_region
      %s362 = ssub.s32 256, 256
      %363 = vsyncadd [#allocation4], %s362
      %s364 = sshll.u32 [#allocation8], 4
      %s365 = int_to_ptr.vmem [resolvable:$true] %s364
      %370 = dma.vmem_to_hbm [thread:$0]  %s365, 256, %s3, [#allocation4], 64, 64, 4
    $region29: #{tpu_custom_call.1} parent=1 // pred_fallthru
      _
    // Predicated region
    $region30: #{tpu_custom_call.1} parent=1 // pred_check
      _
    $region31: #{tpu_custom_call.1} parent=1 // pred_check_branch
      %372 = sbr.rel (0) target = $region33
    $region32: #{tpu_custom_call.1} parent=1 // pred_region
      %373 = dma.done [#allocation4], 256
    $region33: #{tpu_custom_call.1} parent=1 // pred_fallthru
      _
    %374 = vsyncpa [#allocation3], 1
    %375 = vsyncpa [#allocation6], 1
    %376 = vsyncpa [#allocation4], 1

</llo_original>
